<compile_context>
chip_gen: v5e
topology: v5e:2x2
jax: 0.10.0
libtpu: 0.0.40
codegen_flags: <defaults>
</compile_context>

<pallas_src>
import functools
import math

import numpy as np
import jax
import jax.numpy as jnp
from jax.experimental import pallas as pl
from jax.experimental.pallas import tpu as pltpu


_BP = 8      # sublane tile: rows processed per call
_FP = 128    # lane tile: packed width of all layer segments


# ----------------------------- Pallas kernel ------------------------------ #
def _ampcnet_kernel(x_ref, w_ref, b_ref, o_ref, h_scr, *, batch, in_dim, out_dim):
    """x_ref:(batch,in_dim) f32, w_ref:(128,128) bf16|f32, b_ref:(4,8,128) f32,
    o_ref:(batch,out_dim) f32, h_scr:(8,128) f32 scratch."""
    # Build the (8,128) activation tile in VMEM scratch (in-kernel pad of x).
    h_scr[...] = jnp.zeros_like(h_scr)
    h_scr[0:batch, 0:in_dim] = x_ref[...]

    w = w_ref[...]                 # single resident 128x128 weight tile
    cdt = w.dtype                  # MXU input dtype (bf16 default, f32 optional)
    h = h_scr[...].astype(cdt)

    # Three hidden layers: same resident RHS, per-layer bias at its own lanes.
    # (Could be driven with matmul_push_rhs/matmul_acc_lhs to reuse the weight
    #  push explicitly; jnp.dot is kept for lowering robustness.)
    for k in range(3):
        z = jnp.dot(h, w, preferred_element_type=jnp.float32) + b_ref[k]
        h = jnp.tanh(z).astype(cdt)        # tanh/bias/accum in f32; cast for MXU only

    # Output layer: no tanh; result lives at the leading out_dim lanes.
    z = jnp.dot(h, w, preferred_element_type=jnp.float32) + b_ref[3]
    o_ref[...] = z[0:batch, 0:out_dim]


# ------------------------ one-time parameter packing ----------------------- #
def prepare_params(params, use_bf16=True):
    """Pack the 4 Linear layers into one block-superdiagonal 128x128 tile plus a
    (4, 8, 128) bias slab.  Hoisted out of the per-call path."""
    ws = [params["w1"], params["w2"], params["w3"], params["w4"]]   # (in, out)
    bs = [params["b1"], params["b2"], params["b3"], params["b4"]]
    d0 = ws[0].shape[0]
    d1, d2, d3, d4 = [w.shape[1] for w in ws]
    m = max(d0, d4)                       # input rows / output cols share lanes 0..m
    assert m + d1 + d2 + d3 <= _FP, "packed layer widths exceed one 128-lane tile"

    off1 = m
    off2 = off1 + d1
    off3 = off2 + d2
    row_off = [0, off1, off2, off3]       # each layer's input-segment lane offset
    col_off = [off1, off2, off3, 0]       # each layer's output-segment lane offset

    w_tile = jnp.zeros((_FP, _FP), jnp.float32)
    for k, w in enumerate(ws):
        r, c = row_off[k], col_off[k]
        w_tile = w_tile.at[r:r + w.shape[0], c:c + w.shape[1]].set(
            w.astype(jnp.float32))
    w_tile = w_tile.astype(jnp.bfloat16 if use_bf16 else jnp.float32)

    b_stack = jnp.zeros((4, _BP, _FP), jnp.float32)
    for k, b in enumerate(bs):
        c = col_off[k]
        b_stack = b_stack.at[k, :, c:c + b.shape[0]].set(
            jnp.broadcast_to(b.astype(jnp.float32), (_BP, b.shape[0])))
    return w_tile, b_stack


# ------------------------------- forward ----------------------------------- #
@functools.partial(jax.jit, static_argnames=("horizon", "out_dim"))
def ampcnet_forward(x, w_tile, b_stack, *, horizon, out_dim):
    """Pallas implementation of AMPCNet_Inference.forward(x, horizon)."""
    batch, in_dim = x.shape
    assert batch <= _BP, "kernel processes one 8-row sublane tile per call"
    assert in_dim <= _FP, "input feature width > 128 unsupported"
    # `.view(1, horizon, 1)` semantics: total element count must equal horizon.
    assert batch * out_dim == horizon, "view(1,horizon,1) requires batch*out == horizon"

    vmem = pl.BlockSpec(memory_space=pltpu.MemorySpace.VMEM)
    kernel = functools.partial(
        _ampcnet_kernel, batch=batch, in_dim=in_dim, out_dim=out_dim)

    out = pl.pallas_call(
        kernel,
        out_shape=jax.ShapeDtypeStruct((batch, out_dim), jnp.float32),
        in_specs=[vmem, vmem, vmem],
        out_specs=vmem,
        scratch_shapes=[pltpu.VMEM((_BP, _FP), jnp.float32)],
    )(x.astype(jnp.float32), w_tile, b_stack)

    # Metadata-only reshape (tiny array) -> (1, horizon, 1), matching .view().
    return out.reshape(1, horizon, 1)


# --------------------------- parameter creation ---------------------------- #
def init_params(key, input_size, output_size):
    """Deterministic init matching nn.Linear shapes (stored as (in, out))."""
    sizes = [(input_size, 2), (2, 50), (50, 50), (50, output_size)]
    params = {}
    keys = jax.random.split(key, 2 * len(sizes))
    for i, (fan_in, fan_out) in enumerate(sizes):
        bound = 1.0 / math.sqrt(fan_in)   # PyTorch nn.Linear default init range
        params[f"w{i + 1}"] = jax.random.uniform(
            keys[2 * i], (fan_in, fan_out), minval=-bound, maxval=bound,
            dtype=jnp.float32)
        params[f"b{i + 1}"] = jax.random.uniform(
            keys[2 * i + 1], (fan_out,), minval=-bound, maxval=bound,
            dtype=jnp.float32)
    return params


def reference_forward(x, params, horizon):
    """NumPy f32 reference (avoids TPU default-matmul-precision ambiguity)."""
    x = np.asarray(x, np.float32)
    h = np.tanh(x @ np.asarray(params["w1"]) + np.asarray(params["b1"]))
    h = np.tanh(h @ np.asarray(params["w2"]) + np.asarray(params["b2"]))
    h = np.tanh(h @ np.asarray(params["w3"]) + np.asarray(params["b3"]))
    o = h @ np.asarray(params["w4"]) + np.asarray(params["b4"])
    return o.reshape(1, horizon, 1)


# ---------------------------------- main ----------------------------------- #
if __name__ == "__main__":
    INPUT_SIZE = 4
    HORIZON = 8
    OUTPUT_SIZE = HORIZON   # .view(1, horizon, 1) with batch=1 implies out == horizon

    key = jax.random.PRNGKey(0)
    pkey, xkey = jax.random.split(key)
    params = init_params(pkey, INPUT_SIZE, OUTPUT_SIZE)
    x = jax.random.normal(xkey, (1, INPUT_SIZE), dtype=jnp.float32)

    ref = reference_forward(x, params, HORIZON)

    # Default path: bf16 weights / MXU inputs, f32 bias+tanh+accumulation.
    w_bf16, b_bf16 = prepare_params(params, use_bf16=True)
    out = jax.block_until_ready(
        ampcnet_forward(x, w_bf16, b_bf16, horizon=HORIZON, out_dim=OUTPUT_SIZE))
    assert out.shape == (1, HORIZON, 1)
    assert jnp.allclose(out, ref, atol=5e-2, rtol=5e-2), "bf16 path mismatch"

    # Exact f32 path (use_bf16=False) for tolerance validation.
    w_f32, b_f32 = prepare_params(params, use_bf16=False)
    out_f32 = jax.block_until_ready(
        ampcnet_forward(x, w_f32, b_f32, horizon=HORIZON, out_dim=OUTPUT_SIZE))
    assert out_f32.shape == (1, HORIZON, 1)
    assert jnp.allclose(out_f32, ref, atol=1e-4, rtol=1e-4), "f32 path mismatch"

    print("KERNEL_OK")
</pallas_src>

<mosaic_0001>
module attributes {stable_mosaic.version = 11 : i64} {
  func.func @_ampcnet_kernel(%arg0: memref<1x4xf32, #tpu.memory_space<vmem>>, %arg1: memref<128x128xbf16, #tpu.memory_space<vmem>>, %arg2: memref<4x8x128xf32, #tpu.memory_space<vmem>>, %arg3: memref<1x8xf32, #tpu.memory_space<vmem>>, %arg4: memref<8x128xf32, #tpu.memory_space<vmem>>) attributes {dimension_semantics = [], scalar_prefetch = 0 : i64, scratch_operands = 1 : i64, tpu.core_type = #tpu.core_type<tc>} {
    %cst = arith.constant 0.000000e+00 : f32
    %0 = vector.broadcast %cst : f32 to vector<8x128xf32>
    %c0 = arith.constant 0 : index
    %c0_0 = arith.constant 0 : index
    %1 = vector.load %arg4[%c0, %c0_0] : memref<8x128xf32, #tpu.memory_space<vmem>>, vector<8x128xf32>
    tpu.vector_store %arg4[%c0, %c0_0], %0 {strides = array<i32>} : memref<8x128xf32, #tpu.memory_space<vmem>>, vector<8x128xf32>,
    %c0_1 = arith.constant 0 : index
    %c0_2 = arith.constant 0 : index
    %2 = vector.load %arg0[%c0_1, %c0_2] : memref<1x4xf32, #tpu.memory_space<vmem>>, vector<1x4xf32>
    %c0_3 = arith.constant 0 : index
    %c0_4 = arith.constant 0 : index
    %3 = vector.load %arg4[%c0_3, %c0_4] : memref<8x128xf32, #tpu.memory_space<vmem>>, vector<1x4xf32>
    tpu.vector_store %arg4[%c0_3, %c0_4], %2 {strides = array<i32>} : memref<8x128xf32, #tpu.memory_space<vmem>>, vector<1x4xf32>,
    %c0_5 = arith.constant 0 : index
    %c0_6 = arith.constant 0 : index
    %4 = vector.load %arg1[%c0_5, %c0_6] : memref<128x128xbf16, #tpu.memory_space<vmem>>, vector<128x128xbf16>
    %c0_7 = arith.constant 0 : index
    %c0_8 = arith.constant 0 : index
    %5 = vector.load %arg4[%c0_7, %c0_8] : memref<8x128xf32, #tpu.memory_space<vmem>>, vector<8x128xf32>
    %6 = arith.truncf %5 : vector<8x128xf32> to vector<8x128xbf16>
    %cst_9 = arith.constant dense<0.000000e+00> : vector<8x128xf32>
    %7 = tpu.matmul %6, %4, %cst_9 {dimension_numbers = #tpu.dot_dimension_numbers<[1], [0], [0], [1], [0, 0, 1, 1], [], []>} : vector<8x128xbf16>, vector<128x128xbf16>, vector<8x128xf32> -> vector<8x128xf32>
    %c0_10 = arith.constant 0 : index
    %c0_11 = arith.constant 0 : index
    %c0_12 = arith.constant 0 : index
    %8 = vector.load %arg2[%c0_10, %c0_11, %c0_12] : memref<4x8x128xf32, #tpu.memory_space<vmem>>, vector<1x8x128xf32>
    %9 = vector.shape_cast %8 : vector<1x8x128xf32> to vector<8x128xf32>
    %10 = arith.addf %7, %9 : vector<8x128xf32>
    %11 = math.tanh %10 : vector<8x128xf32>
    %12 = arith.truncf %11 : vector<8x128xf32> to vector<8x128xbf16>
    %cst_13 = arith.constant dense<0.000000e+00> : vector<8x128xf32>
    %13 = tpu.matmul %12, %4, %cst_13 {dimension_numbers = #tpu.dot_dimension_numbers<[1], [0], [0], [1], [0, 0, 1, 1], [], []>} : vector<8x128xbf16>, vector<128x128xbf16>, vector<8x128xf32> -> vector<8x128xf32>
    %c1 = arith.constant 1 : index
    %c0_14 = arith.constant 0 : index
    %c0_15 = arith.constant 0 : index
    %14 = vector.load %arg2[%c1, %c0_14, %c0_15] : memref<4x8x128xf32, #tpu.memory_space<vmem>>, vector<1x8x128xf32>
    %15 = vector.shape_cast %14 : vector<1x8x128xf32> to vector<8x128xf32>
    %16 = arith.addf %13, %15 : vector<8x128xf32>
    %17 = math.tanh %16 : vector<8x128xf32>
    %18 = arith.truncf %17 : vector<8x128xf32> to vector<8x128xbf16>
    %cst_16 = arith.constant dense<0.000000e+00> : vector<8x128xf32>
    %19 = tpu.matmul %18, %4, %cst_16 {dimension_numbers = #tpu.dot_dimension_numbers<[1], [0], [0], [1], [0, 0, 1, 1], [], []>} : vector<8x128xbf16>, vector<128x128xbf16>, vector<8x128xf32> -> vector<8x128xf32>
    %c2 = arith.constant 2 : index
    %c0_17 = arith.constant 0 : index
    %c0_18 = arith.constant 0 : index
    %20 = vector.load %arg2[%c2, %c0_17, %c0_18] : memref<4x8x128xf32, #tpu.memory_space<vmem>>, vector<1x8x128xf32>
    %21 = vector.shape_cast %20 : vector<1x8x128xf32> to vector<8x128xf32>
    %22 = arith.addf %19, %21 : vector<8x128xf32>
    %23 = math.tanh %22 : vector<8x128xf32>
    %24 = arith.truncf %23 : vector<8x128xf32> to vector<8x128xbf16>
    %cst_19 = arith.constant dense<0.000000e+00> : vector<8x128xf32>
    %25 = tpu.matmul %24, %4, %cst_19 {dimension_numbers = #tpu.dot_dimension_numbers<[1], [0], [0], [1], [0, 0, 1, 1], [], []>} : vector<8x128xbf16>, vector<128x128xbf16>, vector<8x128xf32> -> vector<8x128xf32>
    %c3 = arith.constant 3 : index
    %c0_20 = arith.constant 0 : index
    %c0_21 = arith.constant 0 : index
    %26 = vector.load %arg2[%c3, %c0_20, %c0_21] : memref<4x8x128xf32, #tpu.memory_space<vmem>>, vector<1x8x128xf32>
    %27 = vector.shape_cast %26 : vector<1x8x128xf32> to vector<8x128xf32>
    %28 = arith.addf %25, %27 : vector<8x128xf32>
    %29 = vector.extract_strided_slice %28 {offsets = [0, 0], sizes = [1, 8], strides = [1, 1]} : vector<8x128xf32> to vector<1x8xf32>
    %c0_22 = arith.constant 0 : index
    %c0_23 = arith.constant 0 : index
    %30 = vector.load %arg3[%c0_22, %c0_23] : memref<1x8xf32, #tpu.memory_space<vmem>>, vector<1x8xf32>
    tpu.vector_store %arg3[%c0_22, %c0_23], %29 {strides = array<i32>} : memref<1x8xf32, #tpu.memory_space<vmem>>, vector<1x8xf32>,
    return
  }
}

</mosaic_0001>

<llo_original>
// kernel: ampcnet_forward.1
$region0: #{ampcnet_forward.1}
  #allocation0 [shape = 'u32[]', space=smem, size = 0x4, offset = 0x4, fixed_abs, tag = 'smem constant byte address 0x4 - core index']
  #allocation1 [shape = 'u32[72,128]{1,0:T(1,128)}', space=vmem, size = 0x9000, scoped, tag = 'internal scratch']
  #allocation2 [shape = 'f32[8,128]{1,0:T(8,128)}', space=vmem, size = 0x1000, scoped, tag = 'scratch operand']
  %s0 = inlined_call_operand.hbm [shape: f32[1,4], index: 0, kind: input, shape index: {}]
  %s1 = inlined_call_operand.hbm [shape: bf16[128,128], index: 1, kind: input, shape index: {}]
  %s2 = inlined_call_operand.hbm [shape: f32[4,8,128], index: 2, kind: input, shape index: {}]
  %s3 = inlined_call_operand.hbm [shape: f32[1,8], index: 3, kind: output, shape index: {}]
  %s4 = sld [smem:[#allocation0]]
  $region34: #{ampcnet_forward.1} parent=0
    _
  %s6 = ssub.s32 1, %s4
  %s7 = scalar_select 0, %s6, %s4
  $region1: #{ampcnet_forward.1} parent=0
    #allocation3 [shape = 'u8[512]{0}', space=vmem, size = 0x400, scoped, tag = 'input window, operand 0, single buffered']
    #allocation4 [shape = 's32[1]{0}', space=sflag, size = 0x4, scoped, tag = 'scoped memory for ampcnet_forward.1']
    #allocation5 [shape = 's32[1]{0}', space=sflag, size = 0x4, scoped, tag = 'scoped memory for ampcnet_forward.1']
    #allocation6 [shape = 'u8[32768]{0}', space=vmem, size = 0x8000, scoped, tag = 'input window, operand 1, single buffered']
    #allocation7 [shape = 's32[1]{0}', space=sflag, size = 0x4, scoped, tag = 'scoped memory for ampcnet_forward.1']
    #allocation8 [shape = 'u8[16384]{0}', space=vmem, size = 0x4000, scoped, tag = 'input window, operand 2, single buffered']
    #allocation9 [shape = 'u8[512]{0}', space=vmem, size = 0x400, scoped, tag = 'output window, operand 0, single buffered']
    %8 = vsyncpa [#allocation4], 0
    %9 = vsyncpa [#allocation7], 0
    %10 = vsyncpa [#allocation5], 0
    // Predicated region
    $region2: #{ampcnet_forward.1} parent=1 // pred_check
      _
    $region3: #{ampcnet_forward.1} parent=1 // pred_check_branch
      %12 = sbr.rel (0) target = $region5
    $region4: #{ampcnet_forward.1} parent=1 // pred_region
      %14 = vsyncadd [#allocation4], 0
      %s16 = sshll.u32 %s0, 4
      %s17 = int_to_ptr.hbm [resolvable:$true] %s16
      %s18 = sshll.u32 [#allocation3], 4
      %s19 = int_to_ptr.vmem [resolvable:$true] %s18
      %21 = dma.hbm_to_vmem [thread:$0]  %s17, 16, %s19, [#allocation4]
    $region5: #{ampcnet_forward.1} parent=1 // pred_fallthru
      _
    // Predicated region
    $region6: #{ampcnet_forward.1} parent=1 // pred_check
      _
    $region7: #{ampcnet_forward.1} parent=1 // pred_check_branch
      %23 = sbr.rel (0) target = $region9
    $region8: #{ampcnet_forward.1} parent=1 // pred_region
      %25 = vsyncadd [#allocation7], 0
      %s26 = sshll.u32 %s1, 4
      %s27 = int_to_ptr.hbm [resolvable:$true] %s26
      %s28 = sshll.u32 [#allocation6], 4
      %s29 = int_to_ptr.vmem [resolvable:$true] %s28
      %34 = dma.hbm_to_vmem [thread:$0]  %s27, 1024, %s29, [#allocation7], 64, 64, 4
    $region9: #{ampcnet_forward.1} parent=1 // pred_fallthru
      _
    // Predicated region
    $region10: #{ampcnet_forward.1} parent=1 // pred_check
      _
    $region11: #{ampcnet_forward.1} parent=1 // pred_check_branch
      %36 = sbr.rel (0) target = $region13
    $region12: #{ampcnet_forward.1} parent=1 // pred_region
      %38 = vsyncadd [#allocation7], 0
      %s39 = sshll.u32 %s2, 4
      %s40 = int_to_ptr.hbm [resolvable:$true] %s39
      %s41 = sshll.u32 [#allocation8], 4
      %s42 = int_to_ptr.vmem [resolvable:$true] %s41
      %47 = dma.hbm_to_vmem [thread:$0]  %s40, 512, %s42, [#allocation7], 128, 128, 8
    $region13: #{ampcnet_forward.1} parent=1 // pred_fallthru
      _
    // Predicated region
    $region14: #{ampcnet_forward.1} parent=1 // pred_check
      _
    $region15: #{ampcnet_forward.1} parent=1 // pred_check_branch
      %49 = sbr.rel (0) target = $region17
    $region16: #{ampcnet_forward.1} parent=1 // pred_region
      %51 = dma.done [#allocation4], 16
    $region17: #{ampcnet_forward.1} parent=1 // pred_fallthru
      _
    // Predicated region
    $region18: #{ampcnet_forward.1} parent=1 // pred_check
      _
    $region19: #{ampcnet_forward.1} parent=1 // pred_check_branch
      %53 = sbr.rel (0) target = $region21
    $region20: #{ampcnet_forward.1} parent=1 // pred_region
      %55 = dma.done [#allocation7], 1024
    $region21: #{ampcnet_forward.1} parent=1 // pred_fallthru
      _
    // Predicated region
    $region22: #{ampcnet_forward.1} parent=1 // pred_check
      _
    $region23: #{ampcnet_forward.1} parent=1 // pred_check_branch
      %57 = sbr.rel (0) target = $region25
    $region24: #{ampcnet_forward.1} parent=1 // pred_region
      %59 = dma.done [#allocation7], 512
    $region25: #{ampcnet_forward.1} parent=1 // pred_fallthru
      _
    %60 = vst [vmem:[#allocation2] sm:$0xff] 0.0
    %v61 = vld [vmem:[#allocation3] sm:$0x1]
    %vm62 = vcmask 24576
    %63 = vst.msk [vmem:[#allocation2] sm:$0x1] %vm62, %v61
    %v64 = vld [vmem:[#allocation6] sm:$0xf]
    %v65 = vld [vmem:[#allocation6 + $0x4] sm:$0xf]
    %v66 = vld [vmem:[#allocation6 + $0x8] sm:$0xf]
    %v67 = vld [vmem:[#allocation6 + $0xc] sm:$0xf]
    %v68 = vld [vmem:[#allocation6 + $0x10] sm:$0xf]
    %v69 = vld [vmem:[#allocation6 + $0x14] sm:$0xf]
    %v70 = vld [vmem:[#allocation6 + $0x18] sm:$0xf]
    %v71 = vld [vmem:[#allocation6 + $0x1c] sm:$0xf]
    %v72 = vld [vmem:[#allocation6 + $0x20] sm:$0xf]
    %v73 = vld [vmem:[#allocation6 + $0x24] sm:$0xf]
    %v74 = vld [vmem:[#allocation6 + $0x28] sm:$0xf]
    %v75 = vld [vmem:[#allocation6 + $0x2c] sm:$0xf]
    %v76 = vld [vmem:[#allocation6 + $0x30] sm:$0xf]
    %v77 = vld [vmem:[#allocation6 + $0x34] sm:$0xf]
    %v78 = vld [vmem:[#allocation6 + $0x38] sm:$0xf]
    %v79 = vld [vmem:[#allocation6 + $0x3c] sm:$0xf]
    %v80 = vld [vmem:[#allocation2] sm:$0xff]
    %v81 = vpack.c.bf16 %v80, %v80
    %v82 = vld [vmem:[#allocation8] sm:$0xff]
    %v99 = vunpack.c.l.b16 %v64
    %v100 = vunpack.c.l.b16 %v65
    %v101 = vunpack.c.l.b16 %v66
    %v102 = vunpack.c.l.b16 %v67
    %v103 = vunpack.c.l.b16 %v68
    %v104 = vunpack.c.l.b16 %v69
    %v105 = vunpack.c.l.b16 %v70
    %v106 = vunpack.c.l.b16 %v71
    %v107 = vunpack.c.l.b16 %v72
    %v108 = vunpack.c.l.b16 %v73
    %v109 = vunpack.c.l.b16 %v74
    %v110 = vunpack.c.l.b16 %v75
    %v111 = vunpack.c.l.b16 %v76
    %v112 = vunpack.c.l.b16 %v77
    %v113 = vunpack.c.l.b16 %v78
    %v114 = vunpack.c.l.b16 %v79
    %v115 = vpack.c.b16 %v100, %v99
    %v116 = vpack.c.b16 %v102, %v101
    %v117 = vpack.c.b16 %v104, %v103
    %v118 = vpack.c.b16 %v106, %v105
    %v119 = vpack.c.b16 %v108, %v107
    %v120 = vpack.c.b16 %v110, %v109
    %v121 = vpack.c.b16 %v112, %v111
    %v122 = vpack.c.b16 %v114, %v113
    %131 = vmatpush.bf16.msra.mxu0 %v122
    %132 = vmatpush.bf16.msra.mxu0 %v121
    %133 = vmatpush.bf16.msra.mxu0 %v120
    %134 = vmatpush.bf16.msra.mxu0 %v119
    %135 = vmatpush.bf16.msra.mxu0 %v118
    %136 = vmatpush.bf16.msra.mxu0 %v117
    %137 = vmatpush.bf16.msra.mxu0 %v116
    %138 = vmatpush.bf16.msra.mxu0 %v115
    %139 = vmatmul.bf16.gmra.mxu0 %v81
    %v140 = vpop.f32.mrf.mxu0
    %v141 = vadd.f32 %v82, %v140
    %v142 = vpop.f32.mrf.mxu0
    %143 = vdwg.mxu0
    %v144 = vtanh.pop %v141
    %v145 = vpack.c.bf16 %v144, %v144
    %s146 = scalar_lea.vmem [#allocation8], 8
    %v147 = vld [vmem:[%s146] sm:$0xff]
    %148 = vmatpush.bf16.msra.mxu0 %v122
    %149 = vmatpush.bf16.msra.mxu0 %v121
    %150 = vmatpush.bf16.msra.mxu0 %v120
    %151 = vmatpush.bf16.msra.mxu0 %v119
    %152 = vmatpush.bf16.msra.mxu0 %v118
    %153 = vmatpush.bf16.msra.mxu0 %v117
    %154 = vmatpush.bf16.msra.mxu0 %v116
    %155 = vmatpush.bf16.msra.mxu0 %v115
    %156 = vmatmul.bf16.gmra.mxu0 %v145
    %v157 = vpop.f32.mrf.mxu0
    %v158 = vadd.f32 %v147, %v157
    %v159 = vpop.f32.mrf.mxu0
    %160 = vdwg.mxu0
    %v161 = vtanh.pop %v158
    %v162 = vpack.c.bf16 %v161, %v161
    %s163 = scalar_lea.vmem [#allocation8], 16
    %v164 = vld [vmem:[%s163] sm:$0xff]
    %165 = vmatpush.bf16.msra.mxu0 %v122
    %166 = vmatpush.bf16.msra.mxu0 %v121
    %167 = vmatpush.bf16.msra.mxu0 %v120
    %168 = vmatpush.bf16.msra.mxu0 %v119
    %169 = vmatpush.bf16.msra.mxu0 %v118
    %170 = vmatpush.bf16.msra.mxu0 %v117
    %171 = vmatpush.bf16.msra.mxu0 %v116
    %172 = vmatpush.bf16.msra.mxu0 %v115
    %173 = vmatmul.bf16.gmra.mxu0 %v162
    %v174 = vpop.f32.mrf.mxu0
    %v175 = vadd.f32 %v164, %v174
    %v176 = vpop.f32.mrf.mxu0
    %177 = vdwg.mxu0
    %v178 = vtanh.pop %v175
    %v179 = vpack.c.bf16 %v178, %v178
    %s180 = scalar_lea.vmem [#allocation8], 24
    %v181 = vld [vmem:[%s180] sm:$0xff]
    %182 = vmatpush.bf16.msra.mxu0 %v122
    %183 = vmatpush.bf16.msra.mxu0 %v121
    %184 = vmatpush.bf16.msra.mxu0 %v120
    %185 = vmatpush.bf16.msra.mxu0 %v119
    %186 = vmatpush.bf16.msra.mxu0 %v118
    %187 = vmatpush.bf16.msra.mxu0 %v117
    %188 = vmatpush.bf16.msra.mxu0 %v116
    %189 = vmatpush.bf16.msra.mxu0 %v115
    %190 = vmatmul.bf16.gmra.mxu0 %v179
    %v191 = vpop.f32.mrf.mxu0
    %v192 = vadd.f32 %v181, %v191
    %v193 = vpop.f32.mrf.mxu0
    %194 = vdwg.mxu0
    %vm195 = vcmask 57344
    %196 = vst.msk [vmem:[#allocation9] sm:$0x1] %vm195, %v192
    // Predicated region
    $region26: #{ampcnet_forward.1} parent=1 // pred_check
      _
    $region27: #{ampcnet_forward.1} parent=1 // pred_check_branch
      %198 = sbr.rel (0) target = $region29
    $region28: #{ampcnet_forward.1} parent=1 // pred_region
      %200 = vsyncadd [#allocation5], 0
      %s202 = sshll.u32 [#allocation9], 4
      %s203 = int_to_ptr.vmem [resolvable:$true] %s202
      %s204 = sshll.u32 %s3, 4
      %s205 = int_to_ptr.hbm [resolvable:$true] %s204
      %207 = dma.vmem_to_hbm [thread:$0]  %s203, 16, %s205, [#allocation5]
    $region29: #{ampcnet_forward.1} parent=1 // pred_fallthru
      _
    // Predicated region
    $region30: #{ampcnet_forward.1} parent=1 // pred_check
      _
    $region31: #{ampcnet_forward.1} parent=1 // pred_check_branch
      %209 = sbr.rel (0) target = $region33
    $region32: #{ampcnet_forward.1} parent=1 // pred_region
      %211 = dma.done [#allocation5], 16
    $region33: #{ampcnet_forward.1} parent=1 // pred_fallthru
      _
    %212 = vsyncpa [#allocation4], 1
    %213 = vsyncpa [#allocation7], 1
    %214 = vsyncpa [#allocation5], 1

</llo_original>
